<compile_context>
chip_gen: v7x
topology: tpu7x:2x2x1
jax: 0.10.0
libtpu: 0.0.40
codegen_flags: <defaults>
</compile_context>

<pallas_src>
import functools

import jax
import jax.numpy as jnp
from jax.experimental import pallas as pl
from jax.experimental.pallas import tpu as pltpu

LN_EPS = 1e-12          # pytorch_pretrained_bert BertLayerNorm eps
NORM_EPS = 1e-12        # torch.nn.functional.normalize default eps

# MXU / lane aligned tile targets. `_tile` falls back to the full dimension whenever
# the target does not divide it (which covers the tiny demo shapes below, and keeps
# every BlockSpec legal w.r.t. the (8, 128) constraint).
TILE_M = 256            # matmul rows per block (multiple of 8)
TILE_N = 256            # matmul output columns per block (multiple of 128/256)
TILE_K = 256            # contraction block (multiple of 256; divides 768 and 3072)
TILE_Q = 256            # attention query block
TILE_KV = 256           # attention key/value block
TILE_ROWS = 512         # row block for the pure-bandwidth LN / pooling kernels

VMEM_LIMIT_BYTES = 48 * 1024 * 1024   # explicit scoped-VMEM budget (safe on v5e/v6e/v7x)


def _tile(dim, target):
    """Aligned tile when it divides `dim`, otherwise the full dimension."""
    return target if dim % target == 0 else dim


def _cparams(dims):
    return pltpu.CompilerParams(dimension_semantics=dims,
                                vmem_limit_bytes=VMEM_LIMIT_BYTES)


# ---------------------------------------------------------------------------
# Tiled matmul + bias (+ GELU) kernel:  y = act(x @ W + b)
# ---------------------------------------------------------------------------
def _matmul_bias_act_kernel(x_ref, w_ref, b_ref, o_ref, acc_ref, *, activation):
    @pl.when(pl.program_id(2) == 0)
    def _():
        acc_ref[...] = jnp.zeros_like(acc_ref)

    acc_ref[...] += jnp.dot(x_ref[...], w_ref[...],
                            preferred_element_type=jnp.float32)

    @pl.when(pl.program_id(2) == pl.num_programs(2) - 1)
    def _():
        y = acc_ref[...] + b_ref[...]
        if activation == "gelu":
            # tanh-approx GELU.
            # TODO(synk): pytorch_pretrained_bert uses the erf-form GELU; erf has no
            #             guaranteed Mosaic lowering, so the tanh approximation is used.
            c = 0.7978845608028654  # sqrt(2/pi)
            y = 0.5 * y * (1.0 + jnp.tanh(c * (y + 0.044715 * y * y * y)))
        o_ref[...] = y.astype(o_ref.dtype)


def matmul_bias_act(x, w, b, activation="none", out_dtype=jnp.bfloat16):
    M, K = x.shape
    N = w.shape[1]
    tm, tn, tk = _tile(M, TILE_M), _tile(N, TILE_N), _tile(K, TILE_K)
    grid = (M // tm, N // tn, K // tk)
    return pl.pallas_call(
        functools.partial(_matmul_bias_act_kernel, activation=activation),
        out_shape=jax.ShapeDtypeStruct((M, N), out_dtype),
        grid=grid,
        in_specs=[
            pl.BlockSpec((tm, tk), lambda i, j, k: (i, k)),
            pl.BlockSpec((tk, tn), lambda i, j, k: (k, j)),
            pl.BlockSpec((1, tn), lambda i, j, k: (0, j)),
        ],
        out_specs=pl.BlockSpec((tm, tn), lambda i, j, k: (i, j)),
        scratch_shapes=[pltpu.VMEM((tm, tn), jnp.float32)],
        compiler_params=_cparams(("parallel", "parallel", "arbitrary")),
    )(x, w, b)


# ---------------------------------------------------------------------------
# Tiled matmul + bias + residual + LayerNorm kernel (N = full hidden width so the
# LayerNorm reduction stays inside one block).
# ---------------------------------------------------------------------------
def _matmul_bias_add_ln_kernel(x_ref, w_ref, b_ref, r_ref, g_ref, bt_ref,
                               o_ref, acc_ref):
    @pl.when(pl.program_id(1) == 0)
    def _():
        acc_ref[...] = jnp.zeros_like(acc_ref)

    acc_ref[...] += jnp.dot(x_ref[...], w_ref[...],
                            preferred_element_type=jnp.float32)

    @pl.when(pl.program_id(1) == pl.num_programs(1) - 1)
    def _():
        h = acc_ref[...] + b_ref[...] + r_ref[...].astype(jnp.float32)
        mu = jnp.mean(h, axis=-1, keepdims=True)
        d = h - mu
        var = jnp.mean(d * d, axis=-1, keepdims=True)
        o_ref[...] = (d * jax.lax.rsqrt(var + LN_EPS) * g_ref[...]
                      + bt_ref[...]).astype(o_ref.dtype)


def matmul_bias_add_ln(x, w, b, resid, gamma, beta, out_dtype=jnp.bfloat16):
    M, K = x.shape
    N = w.shape[1]
    tm, tk = _tile(M, TILE_M), _tile(K, TILE_K)
    grid = (M // tm, K // tk)
    return pl.pallas_call(
        _matmul_bias_add_ln_kernel,
        out_shape=jax.ShapeDtypeStruct((M, N), out_dtype),
        grid=grid,
        in_specs=[
            pl.BlockSpec((tm, tk), lambda i, k: (i, k)),
            pl.BlockSpec((tk, N), lambda i, k: (k, 0)),
            pl.BlockSpec((1, N), lambda i, k: (0, 0)),
            pl.BlockSpec((tm, N), lambda i, k: (i, 0)),
            pl.BlockSpec((1, N), lambda i, k: (0, 0)),
            pl.BlockSpec((1, N), lambda i, k: (0, 0)),
        ],
        out_specs=pl.BlockSpec((tm, N), lambda i, k: (i, 0)),
        scratch_shapes=[pltpu.VMEM((tm, N), jnp.float32)],
        compiler_params=_cparams(("parallel", "arbitrary")),
    )(x, w, b, resid, gamma, beta)


# ---------------------------------------------------------------------------
# Flash-style multi-head self-attention: grid = (B, heads, q-blocks, kv-blocks)
# with online softmax scratch; kv-block axis is the (last, "arbitrary") reduction.
# ---------------------------------------------------------------------------
def _flash_attn_kernel(q_ref, k_ref, v_ref, mask_ref, o_ref,
                       m_sc, l_sc, acc_sc, *, scale):
    kv = pl.program_id(3)

    @pl.when(kv == 0)
    def _():
        m_sc[...] = jnp.full_like(m_sc, -jnp.inf)
        l_sc[...] = jnp.zeros_like(l_sc)
        acc_sc[...] = jnp.zeros_like(acc_sc)

    q = q_ref[...][0, 0]                 # (tq, DH)  bf16
    k = k_ref[...][0, 0]                 # (tkv, DH) bf16
    v = v_ref[...][0, 0]                 # (tkv, DH) bf16
    amask = mask_ref[...][0]             # (1, tkv)  additive key mask

    s = jnp.einsum("qd,kd->qk", q, k,
                   preferred_element_type=jnp.float32) * scale
    s = s + amask                        # broadcast over queries

    m_prev = m_sc[...]
    m_new = jnp.maximum(m_prev, jnp.max(s, axis=-1, keepdims=True))
    alpha = jnp.exp(m_prev - m_new)
    p = jnp.exp(s - m_new)
    l_sc[...] = alpha * l_sc[...] + jnp.sum(p, axis=-1, keepdims=True)
    acc_sc[...] = alpha * acc_sc[...] + jnp.dot(
        p.astype(v.dtype), v, preferred_element_type=jnp.float32)
    m_sc[...] = m_new

    @pl.when(kv == pl.num_programs(3) - 1)
    def _():
        ctx = acc_sc[...] * pl.reciprocal(l_sc[...], approx=True)   # (tq, DH)
        o_ref[...] = ctx[None, None, :, :].astype(o_ref.dtype)


def flash_attention(q, k, v, addmask):
    """q, k, v: (B, NH, S, DH); addmask: (B, 1, S) additive key mask."""
    B, NH, S, DH = q.shape
    scale = 1.0 / (DH ** 0.5)
    tq, tkv = _tile(S, TILE_Q), _tile(S, TILE_KV)
    grid = (B, NH, S // tq, S // tkv)
    q_spec = pl.BlockSpec((1, 1, tq, DH), lambda b, h, qi, ki: (b, h, qi, 0))
    kv_spec = pl.BlockSpec((1, 1, tkv, DH), lambda b, h, qi, ki: (b, h, ki, 0))
    mask_spec = pl.BlockSpec((1, 1, tkv), lambda b, h, qi, ki: (b, 0, ki))
    return pl.pallas_call(
        functools.partial(_flash_attn_kernel, scale=scale),
        out_shape=jax.ShapeDtypeStruct((B, NH, S, DH), q.dtype),
        grid=grid,
        in_specs=[q_spec, kv_spec, kv_spec, mask_spec],
        out_specs=q_spec,
        scratch_shapes=[pltpu.VMEM((tq, 1), jnp.float32),
                        pltpu.VMEM((tq, 1), jnp.float32),
                        pltpu.VMEM((tq, DH), jnp.float32)],
        compiler_params=_cparams(("parallel", "parallel", "parallel", "arbitrary")),
    )(q, k, v, addmask)


# ---------------------------------------------------------------------------
# Row-tiled LayerNorm (embedding LayerNorm)
# ---------------------------------------------------------------------------
def _layernorm_kernel(x_ref, g_ref, b_ref, o_ref):
    h = x_ref[...].astype(jnp.float32)
    mu = jnp.mean(h, axis=-1, keepdims=True)
    d = h - mu
    var = jnp.mean(d * d, axis=-1, keepdims=True)
    o_ref[...] = (d * jax.lax.rsqrt(var + LN_EPS) * g_ref[...]
                  + b_ref[...]).astype(o_ref.dtype)


def layernorm(x, gamma, beta, out_dtype=jnp.bfloat16):
    M, H = x.shape
    tm = _tile(M, TILE_ROWS)
    return pl.pallas_call(
        _layernorm_kernel,
        out_shape=jax.ShapeDtypeStruct((M, H), out_dtype),
        grid=(M // tm,),
        in_specs=[pl.BlockSpec((tm, H), lambda i: (i, 0)),
                  pl.BlockSpec((1, H), lambda i: (0, 0)),
                  pl.BlockSpec((1, H), lambda i: (0, 0))],
        out_specs=pl.BlockSpec((tm, H), lambda i: (i, 0)),
        compiler_params=_cparams(("parallel",)),
    )(x, gamma, beta)


# ---------------------------------------------------------------------------
# Masked pooling + L2 normalize kernel (the BERT.forward tail), tiled over batch
#   triple = sum_s token_type * emb ;  text = sum_s (1-token_type)*not_padding*emb
# ---------------------------------------------------------------------------
def _pool_norm_kernel(emb_ref, tt_ref, np_ref, text_ref, triple_ref):
    emb = emb_ref[...].astype(jnp.float32)     # (tb, S, H)
    tt = tt_ref[...][:, :, None]               # (tb, S, 1)
    npd = np_ref[...][:, :, None]              # (tb, S, 1)
    triple = jnp.sum(tt * emb, axis=1)                         # (tb, H)
    text = jnp.sum((1.0 - tt) * (npd * emb), axis=1)           # (tb, H)

    def _l2(xv):
        ss = jnp.sum(xv * xv, axis=-1, keepdims=True)
        return xv * jax.lax.rsqrt(jnp.maximum(ss, NORM_EPS * NORM_EPS))

    text_ref[...] = _l2(text)
    triple_ref[...] = _l2(triple)


def pool_and_normalize(emb, token_type, not_padding):
    B, S, H = emb.shape
    tb = _tile(B, TILE_ROWS)
    spec3 = pl.BlockSpec((tb, S, H), lambda i: (i, 0, 0))
    spec2 = pl.BlockSpec((tb, S), lambda i: (i, 0))
    out_spec = pl.BlockSpec((tb, H), lambda i: (i, 0))
    return pl.pallas_call(
        _pool_norm_kernel,
        out_shape=(jax.ShapeDtypeStruct((B, H), jnp.float32),
                   jax.ShapeDtypeStruct((B, H), jnp.float32)),
        grid=(B // tb,),
        in_specs=[spec3, spec2, spec2],
        out_specs=(out_spec, out_spec),
        compiler_params=_cparams(("parallel",)),
    )(emb, token_type, not_padding)


# ---------------------------------------------------------------------------
# Model glue (parameter setup, reshapes, embedding gathers)
# ---------------------------------------------------------------------------
def init_params(key, cfg, std=0.02):
    H, I = cfg["hidden"], cfg["intermediate"]
    keys = jax.random.split(key, 3 + cfg["layers"] * 4)
    it = iter(keys)

    def nrm(shape, dtype=jnp.bfloat16):
        return (std * jax.random.normal(next(it), shape, dtype=jnp.float32)).astype(dtype)

    def ones(n):
        return jnp.ones((1, n), jnp.float32)

    def zeros(n):
        return jnp.zeros((1, n), jnp.float32)

    params = {
        "word_emb": nrm((cfg["vocab"], H), jnp.float32),
        "pos_emb": nrm((cfg["max_pos"], H), jnp.float32),
        "type_emb": nrm((2, H), jnp.float32),
        "emb_ln_g": ones(H), "emb_ln_b": zeros(H),
        "layers": [],
    }
    for _ in range(cfg["layers"]):
        params["layers"].append({
            # fused Q/K/V projection: columns are [q | k | v], each head-major.
            "wqkv": nrm((H, 3 * H)), "bqkv": zeros(3 * H),
            "wo": nrm((H, H)), "bo": zeros(H),
            "ln1_g": ones(H), "ln1_b": zeros(H),
            "wi": nrm((H, I)), "bi": zeros(I),
            "wo2": nrm((I, H)), "bo2": zeros(H),
            "ln2_g": ones(H), "ln2_b": zeros(H),
        })
    return params


def bert_layer(x, p, addmask, B, S, cfg):
    H, NH, DH = cfg["hidden"], cfg["heads"], cfg["head_dim"]
    M = B * S

    # fused QKV projection: reads x once for all three projections.
    qkv = matmul_bias_act(x, p["wqkv"], p["bqkv"])                 # (M, 3H) bf16
    # single combined head-split transpose (XLA glue).
    qkv = qkv.reshape(B, S, 3, NH, DH).transpose(2, 0, 3, 1, 4)    # (3, B, NH, S, DH)
    ctx = flash_attention(qkv[0], qkv[1], qkv[2], addmask)         # (B, NH, S, DH)
    ctx = ctx.transpose(0, 2, 1, 3).reshape(M, H)                  # head merge (XLA glue)

    # output projection fused with bias + residual + LayerNorm.
    x = matmul_bias_add_ln(ctx, p["wo"], p["bo"], x, p["ln1_g"], p["ln1_b"])

    # FFN: matmul+bias+GELU, then matmul fused with bias + residual + LayerNorm.
    inter = matmul_bias_act(x, p["wi"], p["bi"], activation="gelu")
    x = matmul_bias_add_ln(inter, p["wo2"], p["bo2"], x, p["ln2_g"], p["ln2_b"])
    return x


def bert_encoder(params, tokens, segments, attn_mask, cfg):
    B, S = tokens.shape
    H = cfg["hidden"]
    # embedding gathers are glue (data-dependent indexing left to XLA)
    x = (params["word_emb"][tokens]
         + params["pos_emb"][None, :S, :]
         + params["type_emb"][segments]).astype(jnp.float32)
    x = layernorm(x.reshape(B * S, H), params["emb_ln_g"], params["emb_ln_b"])  # bf16

    addmask = ((1.0 - attn_mask.astype(jnp.float32)) * -10000.0).reshape(B, 1, S)
    for layer in params["layers"]:
        x = bert_layer(x, layer, addmask, B, S, cfg)
    return x.reshape(B, S, H)


def bert_contrastive_forward(params, tokens, segments, attn_mask, cfg):
    """Equivalent of BERT.forward: returns (text_output, triple_output), both L2-normalized (B, H)."""
    emb = bert_encoder(params, tokens, segments, attn_mask, cfg)   # (B, S, H) bf16
    token_type = segments.astype(jnp.float32)                      # (B, S)
    not_padding = (tokens > 0).astype(jnp.float32)                 # (B, S)
    text_out, triple_out = pool_and_normalize(emb, token_type, not_padding)
    return text_out, triple_out


if __name__ == "__main__":
    cfg = dict(vocab=100, hidden=32, heads=4, head_dim=8, intermediate=64,
               layers=2, max_pos=16)
    B, S = 2, 8

    key = jax.random.PRNGKey(0)
    k_param, k_tok = jax.random.split(key)
    params = init_params(k_param, cfg)

    # Synthetic "tokenized" batch: [CLS]=1, random ids, one padded position (id 0).
    tokens = jax.random.randint(k_tok, (B, S), 2, cfg["vocab"], dtype=jnp.int32)
    tokens = tokens.at[:, 0].set(1)        # [CLS]
    tokens = tokens.at[0, S - 1].set(0)    # padding in example 0
    segments = jnp.concatenate(
        [jnp.zeros((B, S // 2), jnp.int32), jnp.ones((B, S // 2), jnp.int32)], axis=1)
    segments = segments * (tokens > 0)
    attn_mask = (tokens > 0).astype(jnp.int32)

    text_out, triple_out = bert_contrastive_forward(params, tokens, segments, attn_mask, cfg)
    jax.block_until_ready((text_out, triple_out))

    assert text_out.shape == (B, cfg["hidden"]) and triple_out.shape == (B, cfg["hidden"])
    assert bool(jnp.all(jnp.isfinite(text_out))) and bool(jnp.all(jnp.isfinite(triple_out)))
    print("KERNEL_OK")
</pallas_src>

<mosaic_0001>
module attributes {stable_mosaic.version = 11 : i64} {
  func.func @_layernorm_kernel(%arg0: i32, %arg1: memref<16x32xf32, #tpu.memory_space<vmem>>, %arg2: memref<1x32xf32, #tpu.memory_space<vmem>>, %arg3: memref<1x32xf32, #tpu.memory_space<vmem>>, %arg4: memref<16x32xbf16, #tpu.memory_space<vmem>>) attributes {dimension_semantics = [#tpu.dimension_semantics<parallel>], iteration_bounds = array<i64: 1>, scalar_prefetch = 0 : i64, scratch_operands = 0 : i64, tpu.core_type = #tpu.core_type<tc>, window_params = [{transform_indices = @transform_0, window_bounds = array<i64: 16, 32>}, {pipeline_mode = #tpu.pipeline_mode<synchronous>, transform_indices = @transform_1, window_bounds = array<i64: 1, 32>}, {pipeline_mode = #tpu.pipeline_mode<synchronous>, transform_indices = @transform_2, window_bounds = array<i64: 1, 32>}, {transform_indices = @transform_3, window_bounds = array<i64: 16, 32>}]} {
    %c0 = arith.constant 0 : index
    %c0_0 = arith.constant 0 : index
    %0 = vector.load %arg1[%c0, %c0_0] : memref<16x32xf32, #tpu.memory_space<vmem>>, vector<16x32xf32>
    %cst = arith.constant dense<0.000000e+00> : vector<16xf32>
    %1 = vector.multi_reduction <add>, %0, %cst [1] : vector<16x32xf32> to vector<16xf32>
    %2 = vector.shape_cast %1 : vector<16xf32> to vector<16x1xf32>
    %cst_1 = arith.constant 3.200000e+01 : f32
    %3 = vector.broadcast %cst_1 : f32 to vector<16x1xf32>
    %4 = arith.divf %2, %3 : vector<16x1xf32>
    %5 = vector.broadcast %4 : vector<16x1xf32> to vector<16x32xf32>
    %6 = arith.subf %0, %5 : vector<16x32xf32>
    %7 = arith.mulf %6, %6 : vector<16x32xf32>
    %cst_2 = arith.constant dense<0.000000e+00> : vector<16xf32>
    %8 = vector.multi_reduction <add>, %7, %cst_2 [1] : vector<16x32xf32> to vector<16xf32>
    %9 = vector.shape_cast %8 : vector<16xf32> to vector<16x1xf32>
    %cst_3 = arith.constant 3.200000e+01 : f32
    %10 = vector.broadcast %cst_3 : f32 to vector<16x1xf32>
    %11 = arith.divf %9, %10 : vector<16x1xf32>
    %cst_4 = arith.constant 9.99999996E-13 : f32
    %12 = vector.broadcast %cst_4 : f32 to vector<16x1xf32>
    %13 = arith.addf %11, %12 : vector<16x1xf32>
    %14 = math.rsqrt %13 : vector<16x1xf32>
    %15 = vector.broadcast %14 : vector<16x1xf32> to vector<16x32xf32>
    %16 = arith.mulf %6, %15 : vector<16x32xf32>
    %c0_5 = arith.constant 0 : index
    %c0_6 = arith.constant 0 : index
    %17 = vector.load %arg2[%c0_5, %c0_6] : memref<1x32xf32, #tpu.memory_space<vmem>>, vector<1x32xf32>
    %18 = vector.broadcast %17 : vector<1x32xf32> to vector<16x32xf32>
    %19 = arith.mulf %16, %18 : vector<16x32xf32>
    %c0_7 = arith.constant 0 : index
    %c0_8 = arith.constant 0 : index
    %20 = vector.load %arg3[%c0_7, %c0_8] : memref<1x32xf32, #tpu.memory_space<vmem>>, vector<1x32xf32>
    %21 = vector.broadcast %20 : vector<1x32xf32> to vector<16x32xf32>
    %22 = arith.addf %19, %21 : vector<16x32xf32>
    %23 = arith.truncf %22 : vector<16x32xf32> to vector<16x32xbf16>
    %c0_9 = arith.constant 0 : index
    %c0_10 = arith.constant 0 : index
    %24 = vector.load %arg4[%c0_9, %c0_10] : memref<16x32xbf16, #tpu.memory_space<vmem>>, vector<16x32xbf16>
    tpu.vector_store %arg4[%c0_9, %c0_10], %23 {strides = array<i32>} : memref<16x32xbf16, #tpu.memory_space<vmem>>, vector<16x32xbf16>,
    return
  }
  func.func @transform_0(%arg0: i32) -> (i32, i32) {
    %c0_i32 = arith.constant 0 : i32
    %c0_i32_0 = arith.constant 0 : i32
    return %arg0, %c0_i32 : i32, i32
  }
  func.func @transform_1(%arg0: i32) -> (i32, i32) {
    %c0_i32 = arith.constant 0 : i32
    %c0_i32_0 = arith.constant 0 : i32
    %c0_i32_1 = arith.constant 0 : i32
    return %c0_i32, %c0_i32_0 : i32, i32
  }
  func.func @transform_2(%arg0: i32) -> (i32, i32) {
    %c0_i32 = arith.constant 0 : i32
    %c0_i32_0 = arith.constant 0 : i32
    %c0_i32_1 = arith.constant 0 : i32
    return %c0_i32, %c0_i32_0 : i32, i32
  }
  func.func @transform_3(%arg0: i32) -> (i32, i32) {
    %c0_i32 = arith.constant 0 : i32
    %c0_i32_0 = arith.constant 0 : i32
    return %arg0, %c0_i32 : i32, i32
  }
}

</mosaic_0001>

<llo_original>
// kernel: tpu_custom_call.1
$region0: #{tpu_custom_call.1}
  #allocation0 [shape = 'u32[]', space=smem, size = 0x4, offset = 0x4, fixed_abs, tag = 'smem constant byte address 0x4 - core index']
  #allocation1 [shape = 'u32[144,128]{1,0:T(1,128)}', space=vmem, size = 0x12000, scoped, tag = 'internal scratch']
  %s0 = inlined_call_operand.hbm [shape: f32[16,32], index: 0, kind: input, shape index: {}]
  %s1 = inlined_call_operand.vmem [shape: f32[1,32], index: 1, kind: input, shape index: {}]
  %s2 = inlined_call_operand.vmem [shape: f32[1,32], index: 2, kind: input, shape index: {}]
  %s3 = inlined_call_operand.hbm [shape: bf16[16,32], index: 3, kind: output, shape index: {}]
  %s4 = sld [smem:[#allocation0]]
  $region26: #{tpu_custom_call.1} parent=0
    _
  %s6 = ssub.s32 1, %s4
  %s7 = scalar_select 0, %s6, %s4
  $region1: #{tpu_custom_call.1} parent=0
    #allocation2 [shape = 'u8[8192]{0}', space=vmem, size = 0x2000, scoped, tag = 'input window, operand 0, single buffered']
    #allocation3 [shape = 's32[1]{0}', space=sflag, size = 0x4, scoped, tag = 'scoped memory for tpu_custom_call.1']
    #allocation4 [shape = 's32[1]{0}', space=sflag, size = 0x4, scoped, tag = 'scoped memory for tpu_custom_call.1']
    #allocation5 [shape = 'u8[4096]{0}', space=vmem, size = 0x1000, scoped, tag = 'output window, operand 0, single buffered']
    %8 = vsyncpa [#allocation3], 0
    %9 = vsyncpa [#allocation4], 0
    // Predicated region
    $region2: #{tpu_custom_call.1} parent=1 // pred_check
      _
    $region3: #{tpu_custom_call.1} parent=1 // pred_check_branch
      %11 = sbr.rel (0) target = $region5
    $region4: #{tpu_custom_call.1} parent=1 // pred_region
      %s13 = ssub.s32 256, 256
      %14 = vsyncadd [#allocation3], %s13
      %s15 = sshll.u32 [#allocation2], 4
      %s16 = int_to_ptr.vmem [resolvable:$true] %s15
      %21 = dma.hbm_to_vmem [thread:$0]  %s0, 256, %s16, [#allocation3], 128, 128, 8
    $region5: #{tpu_custom_call.1} parent=1 // pred_fallthru
      _
    // Predicated region
    $region6: #{tpu_custom_call.1} parent=1 // pred_check
      _
    $region7: #{tpu_custom_call.1} parent=1 // pred_check_branch
      %23 = sbr.rel (0) target = $region9
    $region8: #{tpu_custom_call.1} parent=1 // pred_region
      _
    $region9: #{tpu_custom_call.1} parent=1 // pred_fallthru
      _
    // Predicated region
    $region10: #{tpu_custom_call.1} parent=1 // pred_check
      _
    $region11: #{tpu_custom_call.1} parent=1 // pred_check_branch
      %25 = sbr.rel (0) target = $region13
    $region12: #{tpu_custom_call.1} parent=1 // pred_region
      _
    $region13: #{tpu_custom_call.1} parent=1 // pred_fallthru
      _
    // Predicated region
    $region14: #{tpu_custom_call.1} parent=1 // pred_check
      _
    $region15: #{tpu_custom_call.1} parent=1 // pred_check_branch
      %27 = sbr.rel (0) target = $region17
    $region16: #{tpu_custom_call.1} parent=1 // pred_region
      %28 = dma.done [#allocation3], 256
    $region17: #{tpu_custom_call.1} parent=1 // pred_fallthru
      _
    %v29 = vld [vmem:[#allocation2] sm:$0xff]
    %v30 = vld [vmem:[#allocation2 + $0x8] sm:$0xff]
    %vm31 = vcmask 261120
    %v32 = vsel %vm31, %v29, 0.0
    %33 = vadd.xlane.f32.xlu0 %v32
    %v34 = vpop.xlane.xlu0 %33
    %v35 = vsel %vm31, %v30, 0.0
    %36 = vadd.xlane.f32.xlu0 %v35
    %v37 = vpop.xlane.xlu0 %36
    %v38 = vrcp.pop 32.0
    %v39 = vmul.f32 %v34, %v38
    %v40 = vmul.f32 %v37, %v38
    %v41 = vsub.f32 %v29, %v39
    %v42 = vsub.f32 %v30, %v40
    %v43 = vmul.f32 %v41, %v41
    %v44 = vmul.f32 %v42, %v42
    %v45 = vsel %vm31, %v43, 0.0
    %46 = vadd.xlane.f32.xlu0 %v45
    %v47 = vpop.xlane.xlu0 %46
    %v48 = vsel %vm31, %v44, 0.0
    %49 = vadd.xlane.f32.xlu0 %v48
    %v50 = vpop.xlane.xlu0 %49
    %v51 = vmul.f32 %v47, %v38
    %v52 = vmul.f32 %v50, %v38
    %v53 = vadd.f32 %v51, 1e-12
    %v54 = vadd.f32 %v52, 1e-12
    %v55 = vrsqrt.pop %v53
    %v56 = vrsqrt.pop %v54
    %v57 = vmul.f32 %v41, %v55
    %v58 = vmul.f32 %v42, %v56
    %v59 = vld [vmem:[%s1] sm:$0x1]
    %v61 = vlaneseq
    %v62 = vshrl.u32 %v61, 7
    %v63 = vsub.s32 0, %v62
    %v64 = vrot.slane %v59, %v63
    %v66 = vmul.f32 %v57, %v64
    %v67 = vmul.f32 %v58, %v64
    %v68 = vld [vmem:[%s2] sm:$0x1]
    %v70 = vlaneseq
    %v71 = vshrl.u32 %v70, 7
    %v72 = vsub.s32 0, %v71
    %v73 = vrot.slane %v68, %v72
    %v75 = vadd.f32 %v66, %v73
    %v76 = vadd.f32 %v67, %v73
    %v77 = vpack.c.bf16 %v76, %v75
    %v79 = vunpack.c.l.b16 %v77
    %v80 = vunpack.c.h.b16 %v77
    %v81 = vpack.c.b16 %v79, %v79
    %v82 = vpack.c.b16 %v80, %v80
    %vm85 = vcmask 257024
    %86 = vst.msk [vmem:[#allocation5] sm:$0xf] %vm85, %v81
    %87 = vst.msk [vmem:[#allocation5 + $0x4] sm:$0xf] %vm85, %v82
    // Predicated region
    $region18: #{tpu_custom_call.1} parent=1 // pred_check
      _
    $region19: #{tpu_custom_call.1} parent=1 // pred_check_branch
      %89 = sbr.rel (0) target = $region21
    $region20: #{tpu_custom_call.1} parent=1 // pred_region
      %s91 = ssub.s32 128, 128
      %92 = vsyncadd [#allocation4], %s91
      %s93 = sshll.u32 [#allocation5], 4
      %s94 = int_to_ptr.vmem [resolvable:$true] %s93
      %99 = dma.vmem_to_hbm [thread:$0]  %s94, 128, %s3, [#allocation4], 64, 64, 4
    $region21: #{tpu_custom_call.1} parent=1 // pred_fallthru
      _
    // Predicated region
    $region22: #{tpu_custom_call.1} parent=1 // pred_check
      _
    $region23: #{tpu_custom_call.1} parent=1 // pred_check_branch
      %101 = sbr.rel (0) target = $region25
    $region24: #{tpu_custom_call.1} parent=1 // pred_region
      %102 = dma.done [#allocation4], 128
    $region25: #{tpu_custom_call.1} parent=1 // pred_fallthru
      _
    %103 = vsyncpa [#allocation3], 1
    %104 = vsyncpa [#allocation4], 1

</llo_original>
